<compile_context>
chip_gen: v5e
topology: v5e:2x2
jax: 0.10.0
libtpu: 0.0.40
codegen_flags: <defaults>
</compile_context>

<pallas_src>
import jax
import jax.numpy as jnp
from jax.experimental import pallas as pl
from jax.experimental.pallas import tpu as pltpu


def _fs_kernel(x_ref, w_ref, o_ref):
    # ReLU the (1, tf) weight slice; cast only if dtypes differ so the
    # broadcasted multiply is a single VPU op per vreg and the store needs no cast.
    w_act = jnp.maximum(w_ref[...], 0)
    if w_act.dtype != x_ref.dtype:
        w_act = w_act.astype(x_ref.dtype)
    o_ref[...] = x_ref[...] * w_act            # (tb, tf) * (1, tf)


def _pick_tiles(B, F, itemsize, tile_bytes):
    """Choose (tb, tf) honoring (sublane, 128) constraints and the tile budget."""
    sub = max(8, 32 // itemsize)               # 8 f32 / 16 bf16 / 32 int8
    row_bytes = F * itemsize

    if sub * row_bytes <= tile_bytes:
        # Preferred path: full-feature rows, tile only over the batch axis.
        tf = F
        budget_rows = max(sub, (tile_bytes // row_bytes) // sub * sub)
        if B <= budget_rows:
            # Whole batch fits one tile -> still split in two (rounded up to the
            # sublane multiple) so a 2-TC chip can shard the grid.
            if B >= 2 * sub:
                half = pl.cdiv(pl.cdiv(B, 2), sub) * sub
                tb = half if half < B else B
            else:
                tb = B                          # full-dim block (always legal)
        else:
            tb = budget_rows
    else:
        # F so wide that even `sub` full rows exceed the budget: split F too.
        tb = sub
        tf = max(128, (tile_bytes // (sub * itemsize)) // 128 * 128)
        tf = min(tf, F)
    return tb, tf


def _fs_call(x, weight, tile_bytes, vmem_limit_bytes):
    B, F = x.shape
    itemsize = jnp.dtype(x.dtype).itemsize
    tb, tf = _pick_tiles(B, F, itemsize, tile_bytes)
    grid = (pl.cdiv(B, tb), pl.cdiv(F, tf))     # feature axis usually has extent 1

    return pl.pallas_call(
        _fs_kernel,
        out_shape=jax.ShapeDtypeStruct((B, F), x.dtype),
        grid=grid,
        in_specs=[
            pl.BlockSpec((tb, tf), lambda i, j: (i, j)),   # x tile
            pl.BlockSpec((1, tf), lambda i, j: (0, j)),    # weight row slice
        ],
        out_specs=pl.BlockSpec((tb, tf), lambda i, j: (i, j)),
        compiler_params=pltpu.CompilerParams(
            dimension_semantics=("parallel", "parallel"),
            vmem_limit_bytes=vmem_limit_bytes),
    )(x, weight)


def feature_selection_forward(x: jax.Array, weight: jax.Array,
                              *, tile_bytes: int = 4 << 20,
                              vmem_limit_bytes: int = 40 << 20) -> jax.Array:
    """out = x * relu(weight);  x: (B, F), weight: (1, F); output dtype = x.dtype."""
    B, F = x.shape
    assert weight.shape == (1, F)

    if F < 128:
        if 128 % F == 0:
            # Lane-dense repack: pack k rows per 128-lane vreg row. Elementwise
            # op, so relu(tile(W)) == tile(relu(W)) and the math is unchanged.
            k = 128 // F
            pad_b = (-B) % k
            xp = jnp.pad(x, ((0, pad_b), (0, 0))) if pad_b else x
            bp = B + pad_b
            x_packed = xp.reshape(bp // k, k * F)
            w_packed = jnp.tile(weight, (1, k))
            out = _fs_call(x_packed, w_packed, tile_bytes, vmem_limit_bytes)
            out = out.reshape(bp, F)
            return out[:B] if pad_b else out
        # F doesn't divide 128 (e.g. 96): pad features to a full lane width so
        # stores are unmasked, then slice the padding back off.
        pad_f = 128 - F
        xp = jnp.pad(x, ((0, 0), (0, pad_f)))
        wp = jnp.pad(weight, ((0, 0), (0, pad_f)))
        out = _fs_call(xp, wp, tile_bytes, vmem_limit_bytes)
        return out[:, :F]

    return _fs_call(x, weight, tile_bytes, vmem_limit_bytes)


if __name__ == "__main__":
    key = jax.random.PRNGKey(0)

    # Small demo matching the module: weight initialized to 1.0 (constant init).
    batch, n_features = 8, 32
    x = jax.random.normal(key, (batch, n_features), dtype=jnp.float32)
    weight = jnp.ones((1, n_features), dtype=jnp.float32)

    out = jax.block_until_ready(feature_selection_forward(x, weight))
    ref = x * jnp.maximum(weight, 0.0)
    assert out.shape == x.shape and out.dtype == x.dtype
    assert jnp.allclose(out, ref, atol=1e-6, rtol=1e-6)

    # Multi-block, full-F-row path (tiny tile budget) with negative weights so
    # the in-kernel ReLU is exercised.
    x2 = jax.random.normal(jax.random.PRNGKey(1), (64, 256), dtype=jnp.float32)
    w2 = jax.random.normal(jax.random.PRNGKey(2), (1, 256), dtype=jnp.float32)
    out2 = jax.block_until_ready(
        feature_selection_forward(x2, w2, tile_bytes=8 * 1024))
    assert jnp.allclose(out2, x2 * jnp.maximum(w2, 0.0), atol=1e-6, rtol=1e-6)

    # Feature-split path (budget too small for even 8 full rows -> grid (8, 2)).
    out3 = jax.block_until_ready(
        feature_selection_forward(x2, w2, tile_bytes=4 * 1024))
    assert jnp.allclose(out3, x2 * jnp.maximum(w2, 0.0), atol=1e-6, rtol=1e-6)

    # Awkward shape: F=96 (pad-to-128 path) and B=50 (partial last batch block).
    x4 = jax.random.normal(jax.random.PRNGKey(3), (50, 96), dtype=jnp.float32)
    w4 = jax.random.normal(jax.random.PRNGKey(4), (1, 96), dtype=jnp.float32)
    out4 = jax.block_until_ready(feature_selection_forward(x4, w4))
    assert jnp.allclose(out4, x4 * jnp.maximum(w4, 0.0), atol=1e-6, rtol=1e-6)

    # bf16 path (16-row sublane multiple for the batch tile).
    x5 = jax.random.normal(jax.random.PRNGKey(5), (32, 256)).astype(jnp.bfloat16)
    w5 = jax.random.normal(jax.random.PRNGKey(6), (1, 256)).astype(jnp.bfloat16)
    out5 = jax.block_until_ready(feature_selection_forward(x5, w5))
    assert out5.dtype == jnp.bfloat16
    assert jnp.allclose(out5.astype(jnp.float32),
                        (x5 * jnp.maximum(w5, 0)).astype(jnp.float32),
                        atol=1e-2, rtol=1e-2)

    print("KERNEL_OK")
</pallas_src>

<mosaic_0001>
module attributes {stable_mosaic.version = 11 : i64} {
  func.func @_fs_kernel(%arg0: i32, %arg1: i32, %arg2: memref<2x128xf32, #tpu.memory_space<vmem>>, %arg3: memref<1x128xf32, #tpu.memory_space<vmem>>, %arg4: memref<2x128xf32, #tpu.memory_space<vmem>>) attributes {dimension_semantics = [#tpu.dimension_semantics<parallel>, #tpu.dimension_semantics<parallel>], iteration_bounds = array<i64: 1, 1>, scalar_prefetch = 0 : i64, scratch_operands = 0 : i64, tpu.core_type = #tpu.core_type<tc>, window_params = [{transform_indices = @transform_0, window_bounds = array<i64: 2, 128>}, {transform_indices = @transform_1, window_bounds = array<i64: 1, 128>}, {transform_indices = @transform_2, window_bounds = array<i64: 2, 128>}]} {
    %c0 = arith.constant 0 : index
    %c0_0 = arith.constant 0 : index
    %0 = vector.load %arg3[%c0, %c0_0] : memref<1x128xf32, #tpu.memory_space<vmem>>, vector<1x128xf32>
    %cst = arith.constant 0.000000e+00 : f32
    %1 = vector.broadcast %cst : f32 to vector<1x128xf32>
    %2 = arith.maximumf %0, %1 : vector<1x128xf32>
    %c0_1 = arith.constant 0 : index
    %c0_2 = arith.constant 0 : index
    %3 = vector.load %arg2[%c0_1, %c0_2] : memref<2x128xf32, #tpu.memory_space<vmem>>, vector<2x128xf32>
    %4 = vector.broadcast %2 : vector<1x128xf32> to vector<2x128xf32>
    %5 = arith.mulf %3, %4 : vector<2x128xf32>
    %c0_3 = arith.constant 0 : index
    %c0_4 = arith.constant 0 : index
    %6 = vector.load %arg4[%c0_3, %c0_4] : memref<2x128xf32, #tpu.memory_space<vmem>>, vector<2x128xf32>
    tpu.vector_store %arg4[%c0_3, %c0_4], %5 {strides = array<i32>} : memref<2x128xf32, #tpu.memory_space<vmem>>, vector<2x128xf32>,
    return
  }
  func.func @transform_0(%arg0: i32, %arg1: i32) -> (i32, i32) {
    %c0_i32 = arith.constant 0 : i32
    return %arg0, %arg1 : i32, i32
  }
  func.func @transform_1(%arg0: i32, %arg1: i32) -> (i32, i32) {
    %c0_i32 = arith.constant 0 : i32
    %c0_i32_0 = arith.constant 0 : i32
    return %c0_i32, %arg1 : i32, i32
  }
  func.func @transform_2(%arg0: i32, %arg1: i32) -> (i32, i32) {
    %c0_i32 = arith.constant 0 : i32
    return %arg0, %arg1 : i32, i32
  }
}

</mosaic_0001>

<llo_original>
// kernel: tpu_custom_call.1
$region0: #{tpu_custom_call.1}
  #allocation0 [shape = 'u32[]', space=smem, size = 0x4, offset = 0x4, fixed_abs, tag = 'smem constant byte address 0x4 - core index']
  #allocation1 [shape = 'u32[72,128]{1,0:T(1,128)}', space=vmem, size = 0x9000, scoped, tag = 'internal scratch']
  %s0 = inlined_call_operand.hbm [shape: f32[2,128], index: 0, kind: input, shape index: {}]
  %s1 = inlined_call_operand.hbm [shape: f32[1,128], index: 1, kind: input, shape index: {}]
  %s2 = inlined_call_operand.hbm [shape: f32[2,128], index: 2, kind: output, shape index: {}]
  %s3 = sld [smem:[#allocation0]]
  $region26: #{tpu_custom_call.1} parent=0
    _
  %s5 = ssub.s32 1, %s3
  %s6 = scalar_select 0, %s5, %s3
  $region1: #{tpu_custom_call.1} parent=0
    #allocation2 [shape = 'u8[1024]{0}', space=vmem, size = 0x400, scoped, tag = 'input window, operand 0, single buffered']
    #allocation3 [shape = 's32[1]{0}', space=sflag, size = 0x4, scoped, tag = 'scoped memory for tpu_custom_call.1']
    #allocation4 [shape = 's32[1]{0}', space=sflag, size = 0x4, scoped, tag = 'scoped memory for tpu_custom_call.1']
    #allocation5 [shape = 'u8[512]{0}', space=vmem, size = 0x400, scoped, tag = 'input window, operand 1, single buffered']
    #allocation6 [shape = 's32[1]{0}', space=sflag, size = 0x4, scoped, tag = 'scoped memory for tpu_custom_call.1']
    #allocation7 [shape = 'u8[1024]{0}', space=vmem, size = 0x400, scoped, tag = 'output window, operand 0, single buffered']
    %7 = vsyncpa [#allocation3], 0
    %8 = vsyncpa [#allocation6], 0
    %9 = vsyncpa [#allocation4], 0
    // Predicated region
    $region2: #{tpu_custom_call.1} parent=1 // pred_check
      _
    $region3: #{tpu_custom_call.1} parent=1 // pred_check_branch
      %11 = sbr.rel (0) target = $region5
    $region4: #{tpu_custom_call.1} parent=1 // pred_region
      %13 = vsyncadd [#allocation3], 0
      %s15 = sshll.u32 %s0, 4
      %s16 = int_to_ptr.hbm [resolvable:$true] %s15
      %s17 = sshll.u32 [#allocation2], 4
      %s18 = int_to_ptr.vmem [resolvable:$true] %s17
      %20 = dma.hbm_to_vmem [thread:$0]  %s16, 32, %s18, [#allocation3]
    $region5: #{tpu_custom_call.1} parent=1 // pred_fallthru
      _
    // Predicated region
    $region6: #{tpu_custom_call.1} parent=1 // pred_check
      _
    $region7: #{tpu_custom_call.1} parent=1 // pred_check_branch
      %22 = sbr.rel (0) target = $region9
    $region8: #{tpu_custom_call.1} parent=1 // pred_region
      %24 = vsyncadd [#allocation6], 0
      %s26 = sshll.u32 %s1, 4
      %s27 = int_to_ptr.hbm [resolvable:$true] %s26
      %s28 = sshll.u32 [#allocation5], 4
      %s29 = int_to_ptr.vmem [resolvable:$true] %s28
      %31 = dma.hbm_to_vmem [thread:$0]  %s27, 16, %s29, [#allocation6]
    $region9: #{tpu_custom_call.1} parent=1 // pred_fallthru
      _
    // Predicated region
    $region10: #{tpu_custom_call.1} parent=1 // pred_check
      _
    $region11: #{tpu_custom_call.1} parent=1 // pred_check_branch
      %33 = sbr.rel (0) target = $region13
    $region12: #{tpu_custom_call.1} parent=1 // pred_region
      %35 = dma.done [#allocation3], 32
    $region13: #{tpu_custom_call.1} parent=1 // pred_fallthru
      _
    // Predicated region
    $region14: #{tpu_custom_call.1} parent=1 // pred_check
      _
    $region15: #{tpu_custom_call.1} parent=1 // pred_check_branch
      %37 = sbr.rel (0) target = $region17
    $region16: #{tpu_custom_call.1} parent=1 // pred_region
      %39 = dma.done [#allocation6], 16
    $region17: #{tpu_custom_call.1} parent=1 // pred_fallthru
      _
    %v40 = vld [vmem:[#allocation5] sm:$0x1]
    %v41 = vmax.f32 %v40, 0.0
    %v42 = vld [vmem:[#allocation2] sm:$0x3]
    %v44 = vperm.slane %v41, 0
    %v46 = vmul.f32 %v42, %v44
    %47 = vst [vmem:[#allocation7] sm:$0x3] %v46
    // Predicated region
    $region18: #{tpu_custom_call.1} parent=1 // pred_check
      _
    $region19: #{tpu_custom_call.1} parent=1 // pred_check_branch
      %49 = sbr.rel (0) target = $region21
    $region20: #{tpu_custom_call.1} parent=1 // pred_region
      %51 = vsyncadd [#allocation4], 0
      %s53 = sshll.u32 [#allocation7], 4
      %s54 = int_to_ptr.vmem [resolvable:$true] %s53
      %s55 = sshll.u32 %s2, 4
      %s56 = int_to_ptr.hbm [resolvable:$true] %s55
      %58 = dma.vmem_to_hbm [thread:$0]  %s54, 32, %s56, [#allocation4]
    $region21: #{tpu_custom_call.1} parent=1 // pred_fallthru
      _
    // Predicated region
    $region22: #{tpu_custom_call.1} parent=1 // pred_check
      _
    $region23: #{tpu_custom_call.1} parent=1 // pred_check_branch
      %60 = sbr.rel (0) target = $region25
    $region24: #{tpu_custom_call.1} parent=1 // pred_region
      %62 = dma.done [#allocation4], 32
    $region25: #{tpu_custom_call.1} parent=1 // pred_fallthru
      _
    %63 = vsyncpa [#allocation3], 1
    %64 = vsyncpa [#allocation6], 1
    %65 = vsyncpa [#allocation4], 1

</llo_original>
